<compile_context>
chip_gen: v7x
topology: tpu7x:2x2x1
jax: 0.10.0
libtpu: 0.0.40
codegen_flags: <defaults>
</compile_context>

<pallas_src>
import jax
import jax.numpy as jnp
from jax import lax
from jax.experimental import pallas as pl
from jax.experimental.pallas import tpu as pltpu


def _heads_kernel(x_ref, w_ref, b_ref, out_ref):
    """Fused two-head linear + per-head log_softmax, lane-dense in and out.

    x_ref:   (TB, H)   pooled-output tile (bf16 or f32)
    w_ref:   (2L, H)   [W_sentiment ; W_domain]  (lane-dense, resident)
    b_ref:   (2L, 1)   [b_sentiment ; b_domain]  (f32, resident)
    out_ref: (2L, TB)  [logp_sentiment ; logp_domain]  (f32, lane-dense store)
    """
    # One MXU pass for both heads: (2L, H) x (TB, H)^T -> (2L, TB), f32 accumulation.
    logits = lax.dot_general(
        w_ref[...], x_ref[...],
        dimension_numbers=(((1,), (1,)), ((), ())),
        preferred_element_type=jnp.float32,
    )
    logits = logits + b_ref[...]                       # (2L, TB) + (2L, 1) lane-broadcast

    L = logits.shape[0] // 2

    def log_softmax_rows(z):                           # stable log_softmax over the label rows
        m = jnp.max(z, axis=0, keepdims=True)
        zz = z - m
        return zz - jnp.log(jnp.sum(jnp.exp(zz), axis=0, keepdims=True))

    out_ref[...] = jnp.concatenate(
        [log_softmax_rows(logits[:L]), log_softmax_rows(logits[L:])], axis=0)


def fuse_head_params(w_sent, b_sent, w_dom, b_dom, compute_dtype=jnp.bfloat16):
    """Fuse the two classifier heads ONCE at parameter-load time (not per forward).

    w_sent/w_dom: (L, H) PyTorch nn.Linear layout (out, in).
    Returns w_fused (2L, H) in compute_dtype (lane-dense), b_fused (2L, 1) f32.
    """
    w = jnp.concatenate([w_sent, w_dom], axis=0).astype(compute_dtype)          # (2L, H)
    b = jnp.concatenate([b_sent, b_dom], axis=0).reshape(-1, 1).astype(jnp.float32)
    return w, b


def adaptation_heads(pooled, w_fused, b_fused, *, tile_b=512):
    """pooled: (B, H). Returns (sentiment_logprobs, domain_logprobs), each (B, L) f32."""
    B, H = pooled.shape
    L2 = w_fused.shape[0]          # 2 * num_labels
    L = L2 // 2

    # Match operand dtypes so the MXU runs a single low-precision pass (no f32 promotion).
    x = pooled.astype(w_fused.dtype)

    # Grid selection: one step for small/medium batches (the ~0.35 us per-step overhead is
    # on par with the entire DMA here); tile at 512 rows (multiple of 128 -> both the
    # (tb, H) input block and the (2L, tb) output block stay layout-legal and unmasked)
    # only for large batches, where "parallel" lets v7x shard the steps across its 2 TCs.
    if B <= 1024:
        tb = B
        b_pad = B
    else:
        tb = tile_b
        b_pad = ((B + tb - 1) // tb) * tb
        if b_pad != B:
            x = jnp.pad(x, ((0, b_pad - B), (0, 0)))
    grid = (b_pad // tb,)

    out = pl.pallas_call(
        _heads_kernel,
        out_shape=jax.ShapeDtypeStruct((L2, b_pad), jnp.float32),
        grid_spec=pltpu.PrefetchScalarGridSpec(
            num_scalar_prefetch=0,
            grid=grid,
            in_specs=[
                pl.BlockSpec((tb, H), lambda i: (i, 0)),    # pooled tile
                pl.BlockSpec((L2, H), lambda i: (0, 0)),    # fused weights (lane-dense, resident)
                pl.BlockSpec((L2, 1), lambda i: (0, 0)),    # fused bias (f32, resident)
            ],
            out_specs=pl.BlockSpec((L2, tb), lambda i: (0, i)),  # lane-dense (2L, B) output
        ),
        compiler_params=pltpu.CompilerParams(
            dimension_semantics=("parallel",)),
    )(x, w_fused, b_fused)

    out = out[:, :B]                                     # drop batch padding (if any)
    return out[:L].T, out[L:].T                          # each (B, L), tiny XLA transposes


def _init_linear(key, fan_in, fan_out):
    # Deterministic nn.Linear-style init: U(-1/sqrt(fan_in), 1/sqrt(fan_in)),
    # PyTorch weight layout (out_features, in_features).
    kw, kb = jax.random.split(key)
    bound = 1.0 / jnp.sqrt(jnp.float32(fan_in))
    w = jax.random.uniform(kw, (fan_out, fan_in), jnp.float32, -bound, bound)
    b = jax.random.uniform(kb, (fan_out,), jnp.float32, -bound, bound)
    return w, b


def reference(pooled, w_sent, b_sent, w_dom, b_dom, compute_dtype=jnp.bfloat16):
    # Pure-JAX reference with the SAME bf16 operand cast / f32 accumulation as the kernel.
    x = pooled.astype(compute_dtype)

    def head(w, b):
        logits = jnp.dot(x, w.astype(compute_dtype).T,
                         preferred_element_type=jnp.float32) + b
        return jax.nn.log_softmax(logits, axis=1)

    return head(w_sent, b_sent), head(w_dom, b_dom)


if __name__ == "__main__":
    # Shapes consistent with the module config: hidden_size=768, num_labels=2; small batch.
    B, H, L = 16, 768, 2

    key = jax.random.PRNGKey(0)
    k_x, k_s, k_d = jax.random.split(key, 3)

    # Stand-in for the BERT pooled output (outputs[1]), shape (B, hidden).
    pooled = jax.random.normal(k_x, (B, H), jnp.float32)

    w_sent, b_sent = _init_linear(k_s, H, L)   # sentiment_classifier Linear (L, H)
    w_dom, b_dom = _init_linear(k_d, H, L)     # domain_classifier Linear (L, H)

    # Fuse once at "parameter load" time, not per forward call.
    w_fused, b_fused = fuse_head_params(w_sent, b_sent, w_dom, b_dom)

    sent_pred, dom_pred = adaptation_heads(pooled, w_fused, b_fused)
    jax.block_until_ready((sent_pred, dom_pred))

    # Sanity check against a pure-JAX reference (same bf16 operands / f32 accumulation).
    ref_sent, ref_dom = reference(pooled, w_sent, b_sent, w_dom, b_dom)
    assert jnp.allclose(sent_pred, ref_sent, atol=2e-3, rtol=2e-3)
    assert jnp.allclose(dom_pred, ref_dom, atol=2e-3, rtol=2e-3)

    print("KERNEL_OK")
</pallas_src>

<mosaic_0001>
module attributes {stable_mosaic.version = 11 : i64} {
  func.func @_heads_kernel(%arg0: i32, %arg1: memref<16x768xbf16, #tpu.memory_space<vmem>>, %arg2: memref<4x768xbf16, #tpu.memory_space<vmem>>, %arg3: memref<4x1xf32, #tpu.memory_space<vmem>>, %arg4: memref<4x16xf32, #tpu.memory_space<vmem>>) attributes {dimension_semantics = [#tpu.dimension_semantics<parallel>], iteration_bounds = array<i64: 1>, scalar_prefetch = 0 : i64, scratch_operands = 0 : i64, tpu.core_type = #tpu.core_type<tc>, window_params = [{transform_indices = @transform_0, window_bounds = array<i64: 16, 768>}, {pipeline_mode = #tpu.pipeline_mode<synchronous>, transform_indices = @transform_1, window_bounds = array<i64: 4, 768>}, {pipeline_mode = #tpu.pipeline_mode<synchronous>, transform_indices = @transform_2, window_bounds = array<i64: 4, 1>}, {transform_indices = @transform_3, window_bounds = array<i64: 4, 16>}]} {
    %c0 = arith.constant 0 : index
    %c0_0 = arith.constant 0 : index
    %0 = vector.load %arg2[%c0, %c0_0] : memref<4x768xbf16, #tpu.memory_space<vmem>>, vector<4x768xbf16>
    %c0_1 = arith.constant 0 : index
    %c0_2 = arith.constant 0 : index
    %1 = vector.load %arg1[%c0_1, %c0_2] : memref<16x768xbf16, #tpu.memory_space<vmem>>, vector<16x768xbf16>
    %cst = arith.constant dense<0.000000e+00> : vector<4x16xf32>
    %2 = tpu.matmul %0, %1, %cst {dimension_numbers = #tpu.dot_dimension_numbers<[1], [1], [0], [0], [0, 0, 1, 0], [], []>} : vector<4x768xbf16>, vector<16x768xbf16>, vector<4x16xf32> -> vector<4x16xf32>
    %c0_3 = arith.constant 0 : index
    %c0_4 = arith.constant 0 : index
    %3 = vector.load %arg3[%c0_3, %c0_4] : memref<4x1xf32, #tpu.memory_space<vmem>>, vector<4x1xf32>
    %4 = vector.broadcast %3 : vector<4x1xf32> to vector<4x16xf32>
    %5 = arith.addf %2, %4 : vector<4x16xf32>
    %6 = vector.extract_strided_slice %5 {offsets = [0, 0], sizes = [2, 16], strides = [1, 1]} : vector<4x16xf32> to vector<2x16xf32>
    %cst_5 = arith.constant dense<0xFF800000> : vector<16xf32>
    %7 = vector.multi_reduction <maximumf>, %6, %cst_5 [0] : vector<2x16xf32> to vector<16xf32>
    %8 = vector.shape_cast %7 : vector<16xf32> to vector<1x16xf32>
    %9 = vector.broadcast %8 : vector<1x16xf32> to vector<2x16xf32>
    %10 = arith.subf %6, %9 : vector<2x16xf32>
    %11 = math.exp %10 : vector<2x16xf32>
    %cst_6 = arith.constant dense<0.000000e+00> : vector<16xf32>
    %12 = vector.multi_reduction <add>, %11, %cst_6 [0] : vector<2x16xf32> to vector<16xf32>
    %13 = vector.shape_cast %12 : vector<16xf32> to vector<1x16xf32>
    %14 = math.log %13 : vector<1x16xf32>
    %15 = vector.broadcast %14 : vector<1x16xf32> to vector<2x16xf32>
    %16 = arith.subf %10, %15 : vector<2x16xf32>
    %17 = vector.extract_strided_slice %5 {offsets = [2, 0], sizes = [2, 16], strides = [1, 1]} : vector<4x16xf32> to vector<2x16xf32>
    %cst_7 = arith.constant dense<0xFF800000> : vector<16xf32>
    %18 = vector.multi_reduction <maximumf>, %17, %cst_7 [0] : vector<2x16xf32> to vector<16xf32>
    %19 = vector.shape_cast %18 : vector<16xf32> to vector<1x16xf32>
    %20 = vector.broadcast %19 : vector<1x16xf32> to vector<2x16xf32>
    %21 = arith.subf %17, %20 : vector<2x16xf32>
    %22 = math.exp %21 : vector<2x16xf32>
    %cst_8 = arith.constant dense<0.000000e+00> : vector<16xf32>
    %23 = vector.multi_reduction <add>, %22, %cst_8 [0] : vector<2x16xf32> to vector<16xf32>
    %24 = vector.shape_cast %23 : vector<16xf32> to vector<1x16xf32>
    %25 = math.log %24 : vector<1x16xf32>
    %26 = vector.broadcast %25 : vector<1x16xf32> to vector<2x16xf32>
    %27 = arith.subf %21, %26 : vector<2x16xf32>
    %28 = tpu.concatenate %16, %27 in 0 : vector<2x16xf32>, vector<2x16xf32> -> vector<4x16xf32>
    %c0_9 = arith.constant 0 : index
    %c0_10 = arith.constant 0 : index
    %29 = vector.load %arg4[%c0_9, %c0_10] : memref<4x16xf32, #tpu.memory_space<vmem>>, vector<4x16xf32>
    tpu.vector_store %arg4[%c0_9, %c0_10], %28 {strides = array<i32>} : memref<4x16xf32, #tpu.memory_space<vmem>>, vector<4x16xf32>,
    return
  }
  func.func @transform_0(%arg0: i32) -> (i32, i32) {
    %c0_i32 = arith.constant 0 : i32
    %c0_i32_0 = arith.constant 0 : i32
    return %arg0, %c0_i32 : i32, i32
  }
  func.func @transform_1(%arg0: i32) -> (i32, i32) {
    %c0_i32 = arith.constant 0 : i32
    %c0_i32_0 = arith.constant 0 : i32
    %c0_i32_1 = arith.constant 0 : i32
    return %c0_i32, %c0_i32_0 : i32, i32
  }
  func.func @transform_2(%arg0: i32) -> (i32, i32) {
    %c0_i32 = arith.constant 0 : i32
    %c0_i32_0 = arith.constant 0 : i32
    %c0_i32_1 = arith.constant 0 : i32
    return %c0_i32, %c0_i32_0 : i32, i32
  }
  func.func @transform_3(%arg0: i32) -> (i32, i32) {
    %c0_i32 = arith.constant 0 : i32
    %c0_i32_0 = arith.constant 0 : i32
    return %c0_i32, %arg0 : i32, i32
  }
}

</mosaic_0001>

<llo_original>
// kernel: tpu_custom_call.1
$region0: #{tpu_custom_call.1}
  #allocation0 [shape = 'u32[]', space=smem, size = 0x4, offset = 0x4, fixed_abs, tag = 'smem constant byte address 0x4 - core index']
  #allocation1 [shape = 'u32[144,128]{1,0:T(1,128)}', space=vmem, size = 0x12000, scoped, tag = 'internal scratch']
  %s0 = inlined_call_operand.hbm [shape: bf16[16,768], index: 0, kind: input, shape index: {}]
  %s1 = inlined_call_operand.hbm [shape: bf16[4,768], index: 1, kind: input, shape index: {}]
  %s2 = inlined_call_operand.vmem [shape: f32[4,1], index: 2, kind: input, shape index: {}]
  %s3 = inlined_call_operand.hbm [shape: f32[4,16], index: 3, kind: output, shape index: {}]
  %s4 = sld [smem:[#allocation0]]
  $region30: #{tpu_custom_call.1} parent=0
    _
  %s6 = ssub.s32 1, %s4
  %s7 = scalar_select 0, %s6, %s4
  $region1: #{tpu_custom_call.1} parent=0
    #allocation2 [shape = 'u8[24576]{0}', space=vmem, size = 0x6000, scoped, tag = 'input window, operand 0, single buffered']
    #allocation3 [shape = 's32[1]{0}', space=sflag, size = 0x4, scoped, tag = 'scoped memory for tpu_custom_call.1']
    #allocation4 [shape = 's32[1]{0}', space=sflag, size = 0x4, scoped, tag = 'scoped memory for tpu_custom_call.1']
    #allocation5 [shape = 'u8[6144]{0}', space=vmem, size = 0x1800, scoped, tag = 'input window, operand 1, single buffered']
    #allocation6 [shape = 's32[1]{0}', space=sflag, size = 0x4, scoped, tag = 'scoped memory for tpu_custom_call.1']
    #allocation7 [shape = 'u8[2048]{0}', space=vmem, size = 0x800, scoped, tag = 'output window, operand 0, single buffered']
    %8 = vsyncpa [#allocation3], 0
    %9 = vsyncpa [#allocation6], 0
    %10 = vsyncpa [#allocation4], 0
    // Predicated region
    $region2: #{tpu_custom_call.1} parent=1 // pred_check
      _
    $region3: #{tpu_custom_call.1} parent=1 // pred_check_branch
      %12 = sbr.rel (0) target = $region5
    $region4: #{tpu_custom_call.1} parent=1 // pred_region
      %s14 = ssub.s32 768, 768
      %15 = vsyncadd [#allocation3], %s14
      %s16 = sshll.u32 [#allocation2], 4
      %s17 = int_to_ptr.vmem [resolvable:$true] %s16
      %22 = dma.hbm_to_vmem [thread:$0]  %s0, 768, %s17, [#allocation3], 384, 384, 24
    $region5: #{tpu_custom_call.1} parent=1 // pred_fallthru
      _
    // Predicated region
    $region6: #{tpu_custom_call.1} parent=1 // pred_check
      _
    $region7: #{tpu_custom_call.1} parent=1 // pred_check_branch
      %24 = sbr.rel (0) target = $region9
    $region8: #{tpu_custom_call.1} parent=1 // pred_region
      %s26 = ssub.s32 192, 192
      %27 = vsyncadd [#allocation6], %s26
      %s29 = sshll.u32 [#allocation5], 4
      %s30 = int_to_ptr.vmem [resolvable:$true] %s29
      %32 = dma.hbm_to_vmem [thread:$0]  %s1, 192, %s30, [#allocation6]
    $region9: #{tpu_custom_call.1} parent=1 // pred_fallthru
      _
    // Predicated region
    $region10: #{tpu_custom_call.1} parent=1 // pred_check
      _
    $region11: #{tpu_custom_call.1} parent=1 // pred_check_branch
      %34 = sbr.rel (0) target = $region13
    $region12: #{tpu_custom_call.1} parent=1 // pred_region
      _
    $region13: #{tpu_custom_call.1} parent=1 // pred_fallthru
      _
    // Predicated region
    $region14: #{tpu_custom_call.1} parent=1 // pred_check
      _
    $region15: #{tpu_custom_call.1} parent=1 // pred_check_branch
      %36 = sbr.rel (0) target = $region17
    $region16: #{tpu_custom_call.1} parent=1 // pred_region
      %37 = dma.done [#allocation3], 768
    $region17: #{tpu_custom_call.1} parent=1 // pred_fallthru
      _
    // Predicated region
    $region18: #{tpu_custom_call.1} parent=1 // pred_check
      _
    $region19: #{tpu_custom_call.1} parent=1 // pred_check_branch
      %39 = sbr.rel (0) target = $region21
    $region20: #{tpu_custom_call.1} parent=1 // pred_region
      %40 = dma.done [#allocation6], 192
    $region21: #{tpu_custom_call.1} parent=1 // pred_fallthru
      _
    %v42 = vld [vmem:[#allocation5] sm:$0xff]
    %v43 = vld [vmem:[#allocation5 + $0x8] sm:$0xf]
    %v44 = vld [vmem:[#allocation2] sm:$0xff]
    %v45 = vld [vmem:[#allocation2 + $0x8] sm:$0xff]
    %v46 = vld [vmem:[#allocation2 + $0x10] sm:$0xff]
    %v47 = vld [vmem:[#allocation2 + $0x18] sm:$0xff]
    %v48 = vld [vmem:[#allocation2 + $0x20] sm:$0xff]
    %v49 = vld [vmem:[#allocation2 + $0x28] sm:$0xff]
    %v50 = vld [vmem:[%s2] sm:$0xf]
    %52 = vset.pattern.permute.xlu0 0
    %53 = vperm.xlu0 %52, %v50
    %v54 = vpop.permute.xlu0 %53
    %v58 = vcombine.high %v42, %v42
    %v60 = vunpack.c.l.s4 1983009808
    %v61 = vunpack.c.0.s8 %v60
    %v62 = vlaneseq
    %v63 = vshrl.u32 %v62, 7
    %v64 = vsub.s32 %v61, %v63
    %v65 = vrot.slane %v42, %v64
    %v67 = vunpack.c.l.s4 1983009808
    %v68 = vunpack.c.0.s8 %v67
    %v69 = vlaneseq
    %v70 = vshrl.u32 %v69, 7
    %v71 = vsub.s32 %v68, %v70
    %v72 = vrot.slane %v58, %v71
    %v73 = vcombine.high %v65, %v65
    %v74 = vcombine.high %v72, %v72
    %v76 = vunpack.c.l.s4 1983009808
    %v77 = vunpack.c.0.s8 %v76
    %v78 = vlaneseq
    %v79 = vshrl.u32 %v78, 7
    %v80 = vsub.s32 %v77, %v79
    %v81 = vrot.slane %v43, %v80
    %v82 = vcombine.high %v81, %v81
    %v95 = vunpack.c.l.b16 %v44
    %v96 = vunpack.c.h.b16 %v44
    %v97 = vunpack.c.l.b16 %v45
    %v98 = vunpack.c.h.b16 %v45
    %v99 = vunpack.c.l.b16 %v46
    %v100 = vunpack.c.h.b16 %v46
    %v101 = vunpack.c.l.b16 %v47
    %v102 = vunpack.c.h.b16 %v47
    %v103 = vunpack.c.l.b16 %v48
    %v104 = vunpack.c.h.b16 %v48
    %v105 = vunpack.c.l.b16 %v49
    %v106 = vunpack.c.h.b16 %v49
    %v107 = vpack.c.b16 %v101, %v95
    %v108 = vpack.c.b16 %v102, %v96
    %v109 = vpack.c.b16 %v103, %v97
    %v110 = vpack.c.b16 %v104, %v98
    %v111 = vpack.c.b16 %v105, %v99
    %v112 = vpack.c.b16 %v106, %v100
    %119 = vmatprep.subr.bf16.mxu0 %v108
    %120 = vmatpush1.bf16.xpose.msra.mxu0 %v107
    %121 = vmatprep.subr.bf16.mxu0 0
    %122 = vmatpush1.bf16.xpose.msra.mxu0 0
    %123 = vmatprep.subr.bf16.mxu0 0
    %124 = vmatpush1.bf16.xpose.msra.mxu0 0
    %125 = vmatprep.subr.bf16.mxu0 0
    %126 = vmatpush1.bf16.xpose.msra.mxu0 0
    %127 = vmatprep.subr.bf16.mxu0 0
    %128 = vmatpush1.bf16.xpose.msra.mxu0 0
    %129 = vmatprep.subr.bf16.mxu0 0
    %130 = vmatpush1.bf16.xpose.msra.mxu0 0
    %131 = vmatprep.subr.bf16.mxu0 0
    %132 = vmatpush1.bf16.xpose.msra.mxu0 0
    %133 = vmatprep.subr.bf16.mxu0 0
    %134 = vmatpush1.bf16.xpose.msra.mxu0 0
    %135 = vmatprep.subr.bf16.mxu0 0
    %136 = vmatpush1.bf16.xpose.msra.mxu0 0
    %137 = vmatprep.subr.bf16.mxu0 0
    %138 = vmatpush1.bf16.xpose.msra.mxu0 0
    %139 = vmatprep.subr.bf16.mxu0 0
    %140 = vmatpush1.bf16.xpose.msra.mxu0 0
    %141 = vmatprep.subr.bf16.mxu0 0
    %142 = vmatpush1.bf16.xpose.msra.mxu0 0
    %143 = vmatprep.subr.bf16.mxu0 0
    %144 = vmatpush1.bf16.xpose.msra.mxu0 0
    %145 = vmatprep.subr.bf16.mxu0 0
    %146 = vmatpush1.bf16.xpose.msra.mxu0 0
    %147 = vmatprep.subr.bf16.mxu0 0
    %148 = vmatpush1.bf16.xpose.msra.mxu0 0
    %149 = vmatprep.subr.bf16.mxu0 0
    %150 = vmatpush1.bf16.xpose.msra.mxu0 0
    %151 = vmatprep.mubr.bf16.mxu0 %v73
    %152 = vmatmul.mubr.bf16.gmra.mrb[0].mxu0 %v65
    %v153 = vpop.f32.mrb[0].mxu0
    %v154 = vadd.f32 %v54, %v153
    %v155 = vpop.f32.mrb[0].mxu0
    %v156 = vpop.f32.mrb[0].mxu0
    %v157 = vpop.f32.mrb[0].mxu0
    %158 = vdwg.mxu0
    %159 = vmatprep.subr.bf16.mxu0 %v110
    %160 = vmatpush1.bf16.xpose.msra.mxu0 %v109
    %161 = vmatprep.subr.bf16.mxu0 0
    %162 = vmatpush1.bf16.xpose.msra.mxu0 0
    %163 = vmatprep.subr.bf16.mxu0 0
    %164 = vmatpush1.bf16.xpose.msra.mxu0 0
    %165 = vmatprep.subr.bf16.mxu0 0
    %166 = vmatpush1.bf16.xpose.msra.mxu0 0
    %167 = vmatprep.subr.bf16.mxu0 0
    %168 = vmatpush1.bf16.xpose.msra.mxu0 0
    %169 = vmatprep.subr.bf16.mxu0 0
    %170 = vmatpush1.bf16.xpose.msra.mxu0 0
    %171 = vmatprep.subr.bf16.mxu0 0
    %172 = vmatpush1.bf16.xpose.msra.mxu0 0
    %173 = vmatprep.subr.bf16.mxu0 0
    %174 = vmatpush1.bf16.xpose.msra.mxu0 0
    %175 = vmatprep.subr.bf16.mxu0 0
    %176 = vmatpush1.bf16.xpose.msra.mxu0 0
    %177 = vmatprep.subr.bf16.mxu0 0
    %178 = vmatpush1.bf16.xpose.msra.mxu0 0
    %179 = vmatprep.subr.bf16.mxu0 0
    %180 = vmatpush1.bf16.xpose.msra.mxu0 0
    %181 = vmatprep.subr.bf16.mxu0 0
    %182 = vmatpush1.bf16.xpose.msra.mxu0 0
    %183 = vmatprep.subr.bf16.mxu0 0
    %184 = vmatpush1.bf16.xpose.msra.mxu0 0
    %185 = vmatprep.subr.bf16.mxu0 0
    %186 = vmatpush1.bf16.xpose.msra.mxu0 0
    %187 = vmatprep.subr.bf16.mxu0 0
    %188 = vmatpush1.bf16.xpose.msra.mxu0 0
    %189 = vmatprep.subr.bf16.mxu0 0
    %190 = vmatpush1.bf16.xpose.msra.mxu0 0
    %191 = vmatprep.mubr.bf16.mxu0 %v74
    %192 = vmatmul.mubr.bf16.gmra.mrb[0].mxu0 %v72
    %v193 = vpop.f32.mrb[0].mxu0
    %v194 = vadd.f32 %v154, %v193
    %v195 = vpop.f32.mrb[0].mxu0
    %v196 = vpop.f32.mrb[0].mxu0
    %v197 = vpop.f32.mrb[0].mxu0
    %198 = vdwg.mxu0
    %199 = vmatprep.subr.bf16.mxu0 %v112
    %200 = vmatpush1.bf16.xpose.msra.mxu0 %v111
    %201 = vmatprep.subr.bf16.mxu0 0
    %202 = vmatpush1.bf16.xpose.msra.mxu0 0
    %203 = vmatprep.subr.bf16.mxu0 0
    %204 = vmatpush1.bf16.xpose.msra.mxu0 0
    %205 = vmatprep.subr.bf16.mxu0 0
    %206 = vmatpush1.bf16.xpose.msra.mxu0 0
    %207 = vmatprep.subr.bf16.mxu0 0
    %208 = vmatpush1.bf16.xpose.msra.mxu0 0
    %209 = vmatprep.subr.bf16.mxu0 0
    %210 = vmatpush1.bf16.xpose.msra.mxu0 0
    %211 = vmatprep.subr.bf16.mxu0 0
    %212 = vmatpush1.bf16.xpose.msra.mxu0 0
    %213 = vmatprep.subr.bf16.mxu0 0
    %214 = vmatpush1.bf16.xpose.msra.mxu0 0
    %215 = vmatprep.subr.bf16.mxu0 0
    %216 = vmatpush1.bf16.xpose.msra.mxu0 0
    %217 = vmatprep.subr.bf16.mxu0 0
    %218 = vmatpush1.bf16.xpose.msra.mxu0 0
    %219 = vmatprep.subr.bf16.mxu0 0
    %220 = vmatpush1.bf16.xpose.msra.mxu0 0
    %221 = vmatprep.subr.bf16.mxu0 0
    %222 = vmatpush1.bf16.xpose.msra.mxu0 0
    %223 = vmatprep.subr.bf16.mxu0 0
    %224 = vmatpush1.bf16.xpose.msra.mxu0 0
    %225 = vmatprep.subr.bf16.mxu0 0
    %226 = vmatpush1.bf16.xpose.msra.mxu0 0
    %227 = vmatprep.subr.bf16.mxu0 0
    %228 = vmatpush1.bf16.xpose.msra.mxu0 0
    %229 = vmatprep.subr.bf16.mxu0 0
    %230 = vmatpush1.bf16.xpose.msra.mxu0 0
    %231 = vmatprep.mubr.bf16.mxu0 %v82
    %232 = vmatmul.mubr.bf16.gmra.mrb[0].mxu0 %v81
    %v233 = vpop.f32.mrb[0].mxu0
    %v234 = vadd.f32 %v194, %v233
    %v235 = vpop.f32.mrb[0].mxu0
    %v236 = vpop.f32.mrb[0].mxu0
    %v237 = vpop.f32.mrb[0].mxu0
    %238 = vdwg.mxu0
    %vm239 = vcmask 123904
    %v240 = vsel %vm239, %v234, -inf
    %v241 = vrot.slane %v240, 4
    %v242 = vmax.f32 %v240, %v241
    %v243 = vrot.slane %v242, 2
    %v244 = vmax.f32 %v242, %v243
    %v245 = vrot.slane %v244, 1
    %v246 = vmax.f32 %v244, %v245
    %v247 = vsub.f32 %v234, %v246
    %v248 = vmul.f32 %v247, 1.442695
    %v249 = vpow.pop %v248
    %v250 = vsel %vm239, %v249, 0.0
    %v251 = vrot.slane %v250, 4
    %v252 = vadd.f32 %v250, %v251
    %v253 = vrot.slane %v252, 2
    %v254 = vadd.f32 %v252, %v253
    %v255 = vrot.slane %v254, 1
    %v256 = vadd.f32 %v254, %v255
    %v257 = vlog2.pop %v256
    %v258 = vmul.f32 %v257, 0.6931472
    %v259 = vsub.f32 %v247, %v258
    %vm260 = vcmask 125954
    %v261 = vsel %vm260, %v234, -inf
    %v262 = vrot.slane %v261, 4
    %v263 = vmax.f32 %v261, %v262
    %v264 = vrot.slane %v263, 2
    %v265 = vmax.f32 %v263, %v264
    %v266 = vrot.slane %v265, 1
    %v267 = vmax.f32 %v265, %v266
    %v268 = vsub.f32 %v234, %v267
    %v269 = vmul.f32 %v268, 1.442695
    %v270 = vpow.pop %v269
    %v272 = vrot.slane %v270, 2
    %v274 = vsel %vm239, %v272, 0.0
    %v275 = vrot.slane %v274, 4
    %v276 = vadd.f32 %v274, %v275
    %v277 = vrot.slane %v276, 2
    %v278 = vadd.f32 %v276, %v277
    %v279 = vrot.slane %v278, 1
    %v280 = vadd.f32 %v278, %v279
    %v281 = vlog2.pop %v280
    %v282 = vmul.f32 %v281, 0.6931472
    %v283 = vsub.f32 %v268, %v282
    %vm284 = vcmask 1041408
    %v285 = vsel %vm284, %v259, %v283
    %vm286 = vcmask 125952
    %287 = vst.msk [vmem:[#allocation7] sm:$0xf] %vm286, %v285
    // Predicated region
    $region22: #{tpu_custom_call.1} parent=1 // pred_check
      _
    $region23: #{tpu_custom_call.1} parent=1 // pred_check_branch
      %289 = sbr.rel (0) target = $region25
    $region24: #{tpu_custom_call.1} parent=1 // pred_region
      %s291 = ssub.s32 64, 64
      %292 = vsyncadd [#allocation4], %s291
      %s294 = sshll.u32 [#allocation7], 4
      %s295 = int_to_ptr.vmem [resolvable:$true] %s294
      %297 = dma.vmem_to_hbm [thread:$0]  %s295, 64, %s3, [#allocation4]
    $region25: #{tpu_custom_call.1} parent=1 // pred_fallthru
      _
    // Predicated region
    $region26: #{tpu_custom_call.1} parent=1 // pred_check
      _
    $region27: #{tpu_custom_call.1} parent=1 // pred_check_branch
      %299 = sbr.rel (0) target = $region29
    $region28: #{tpu_custom_call.1} parent=1 // pred_region
      %300 = dma.done [#allocation4], 64
    $region29: #{tpu_custom_call.1} parent=1 // pred_fallthru
      _
    %301 = vsyncpa [#allocation3], 1
    %302 = vsyncpa [#allocation6], 1
    %303 = vsyncpa [#allocation4], 1

</llo_original>
